<compile_context>
chip_gen: v7x
topology: tpu7x:2x2x1
jax: 0.10.0
libtpu: 0.0.40
codegen_flags: <defaults>
</compile_context>

<pallas_src>
import functools

import jax
import jax.numpy as jnp
from jax.experimental import pallas as pl
from jax.experimental.pallas import tpu as pltpu

HID1 = 200                    # fc1 / fc_mu / fc_sigma hidden width (logical)
HID2 = 100                    # fc2 / fc_value hidden width (logical)
HID1_PAD = 256                # lane-aligned padding of HID1
HID2_PAD = 128                # lane-aligned padding of HID2
TRUNK = HID1_PAD + HID2_PAD   # 384 = fused trunk width (multiple of 128)
HEAD_PAD = 128                # lane-dense fused head width (mu | sigma | value | 0-pad)
BIAS_LANE = TRUNK - 1         # zero-weight trunk lane that carries constant 1.0
MAX_TB = 512                  # batch-tile cap for training-scale batches
B_ALIGN = 16                  # bf16 activation sublane alignment


def _round_up(n, m):
    return ((n + m - 1) // m) * m


def a3c_kernel(x_ref, wt_ref, wh_ref, out_ref, *, action_dim):
    A = action_dim
    x = x_ref[...]                                       # (TB, S+1) bf16 (ones col folded in)

    # --- fused trunk matmul: [h1_pad | h2_pad | ... | bias-lane] one MXU pass --
    h = jnp.dot(x, wt_ref[...], preferred_element_type=jnp.float32)   # f32 acc
    h = jnp.clip(h, 0.0, 6.0)                            # relu6 in f32 on (TB, 384)
    # padded lanes stay exactly 0; BIAS_LANE is exactly 1.0 (relu6(1) = 1).

    # --- fused head matmul: [mu_pre | sigma_pre | value | 0] ------------------
    # cast h to bf16 only as the MXU operand; accumulate + epilogue stay f32.
    z = jnp.dot(h.astype(jnp.bfloat16), wh_ref[...],
                preferred_element_type=jnp.float32)      # (TB, 128) f32

    # epilogue: per-lane activation select (lane-dense, full 128-lane vreg ops).
    lane = jax.lax.broadcasted_iota(jnp.int32, z.shape, 1)
    mu_v = 2.0 * jnp.tanh(z)
    # stable single-exp softplus: max(z,0) + log1p(exp(-|z|))
    sigma_v = jnp.maximum(z, 0.0) + jnp.log1p(jnp.exp(-jnp.abs(z))) + 0.001
    out = jnp.where(lane < A, mu_v, jnp.where(lane < 2 * A, sigma_v, z))
    out_ref[...] = out


def init_params(key, state_dim, action_dim):
    """Deterministic init mimicking the usual A3C set_init:
    weights ~ N(0, 0.1), biases = 0. Weights stored as (in, out), f32."""
    ks = jax.random.split(key, 5)

    def w(k, shape):
        return (0.1 * jax.random.normal(k, shape)).astype(jnp.float32)

    return dict(
        w1=w(ks[0], (state_dim, HID1)),    b1=jnp.zeros((1, HID1), jnp.float32),
        wmu=w(ks[1], (HID1, action_dim)),  bmu=jnp.zeros((1, action_dim), jnp.float32),
        wsig=w(ks[2], (HID1, action_dim)), bsig=jnp.zeros((1, action_dim), jnp.float32),
        w2=w(ks[3], (state_dim, HID2)),    b2=jnp.zeros((1, HID2), jnp.float32),
        wv=w(ks[4], (HID2, 1)),            bv=jnp.zeros((1, 1), jnp.float32),
    )


def pack_params(p, state_dim, action_dim):
    """Pack the 10 per-layer tensors into 2 lane-aligned bf16 slabs (do once).

    wt: (state_dim+1, 384)  rows 0:state_dim = [w1 | 0 | w2 | 0], last row =
        folded biases [b1 | 0 | b2 | 0] plus a 1.0 at BIAS_LANE (bias carrier).
    wh: (384, 128)          rows 0:200 = [wmu | wsig | 0], rows 256:356 = value
        weights in lane 2A, row BIAS_LANE = [bmu | bsig | bv | 0].
    """
    A = int(action_dim)
    assert 2 * A + 1 <= HEAD_PAD, "lane-packed head overflows 128 lanes"
    assert BIAS_LANE >= HID1_PAD + HID2, "bias lane must be a zero-weight pad lane"
    S1 = state_dim + 1

    wt = jnp.zeros((S1, TRUNK), jnp.float32)
    wt = wt.at[:state_dim, :HID1].set(p["w1"])
    wt = wt.at[state_dim, :HID1].set(p["b1"][0])
    wt = wt.at[:state_dim, HID1_PAD:HID1_PAD + HID2].set(p["w2"])
    wt = wt.at[state_dim, HID1_PAD:HID1_PAD + HID2].set(p["b2"][0])
    wt = wt.at[state_dim, BIAS_LANE].set(1.0)            # drives h[:, BIAS_LANE] = 1.0

    wh = jnp.zeros((TRUNK, HEAD_PAD), jnp.float32)
    wh = wh.at[:HID1, 0:A].set(p["wmu"])
    wh = wh.at[:HID1, A:2 * A].set(p["wsig"])
    wh = wh.at[HID1_PAD:HID1_PAD + HID2, 2 * A:2 * A + 1].set(p["wv"])
    wh = wh.at[BIAS_LANE, 0:A].set(p["bmu"][0])
    wh = wh.at[BIAS_LANE, A:2 * A].set(p["bsig"][0])
    wh = wh.at[BIAS_LANE, 2 * A:2 * A + 1].set(p["bv"][0])

    # bf16 MXU operands (accumulation stays f32 inside the kernel).
    return dict(wt=wt.astype(jnp.bfloat16), wh=wh.astype(jnp.bfloat16))


def a3c_forward(x, packed, action_dim):
    A = int(action_dim)                                   # must be compile-time int
    assert 2 * A + 1 <= HEAD_PAD, "lane-packed head overflows 128 lanes"
    B, S = x.shape
    S1 = S + 1

    # Fold biases: append ones column; cast MXU operand to bf16.
    x_aug = jnp.concatenate([x, jnp.ones((B, 1), x.dtype)], axis=1).astype(jnp.bfloat16)

    # Pad batch to a sublane-aligned multiple; tile it for training-scale B so
    # weights stay VMEM-resident across grid steps and v7x's 2nd TC gets work.
    B_al = _round_up(B, B_ALIGN)
    TB = min(B_al, MAX_TB)
    B_pad = _round_up(B, TB)
    if B_pad != B:
        x_aug = jnp.pad(x_aug, ((0, B_pad - B), (0, 0)))
    grid = (B_pad // TB,)

    flops = 2 * B_pad * (S1 * TRUNK + TRUNK * HEAD_PAD)
    bytes_accessed = (2 * (x_aug.size + packed["wt"].size + packed["wh"].size)
                      + 4 * B_pad * HEAD_PAD)

    out = pl.pallas_call(
        functools.partial(a3c_kernel, action_dim=A),
        out_shape=jax.ShapeDtypeStruct((B_pad, HEAD_PAD), jnp.float32),
        grid=grid,
        in_specs=[
            pl.BlockSpec((TB, S1), lambda i: (i, 0)),          # batch-tiled activations
            pl.BlockSpec((S1, TRUNK), lambda i: (0, 0)),       # weights resident in VMEM
            pl.BlockSpec((TRUNK, HEAD_PAD), lambda i: (0, 0)), # weights resident in VMEM
        ],
        out_specs=pl.BlockSpec((TB, HEAD_PAD), lambda i: (i, 0)),
        compiler_params=pltpu.CompilerParams(
            dimension_semantics=("parallel",)),
        cost_estimate=pl.CostEstimate(
            flops=flops,
            transcendentals=3 * B_pad * HEAD_PAD,
            bytes_accessed=bytes_accessed),
    )(x_aug, packed["wt"], packed["wh"])

    mu = out[:B, :A]
    sigma = out[:B, A:2 * A]
    values = out[:B, 2 * A:2 * A + 1]
    return mu, sigma, values


def a3c_forward_ref(x, p):
    """Pure-JAX f32 reference (unfused) for correctness checking."""
    h1 = jnp.clip(x @ p["w1"] + p["b1"], 0.0, 6.0)
    mu = 2.0 * jnp.tanh(h1 @ p["wmu"] + p["bmu"])
    sigma = jax.nn.softplus(h1 @ p["wsig"] + p["bsig"]) + 0.001
    h2 = jnp.clip(x @ p["w2"] + p["b2"], 0.0, 6.0)
    values = h2 @ p["wv"] + p["bv"]
    return mu, sigma, values


if __name__ == "__main__":
    key = jax.random.PRNGKey(0)
    k_param, k_x = jax.random.split(key)

    state_dim, action_dim, batch = 16, 4, 8
    params = init_params(k_param, state_dim, action_dim)
    packed = pack_params(params, state_dim, action_dim)
    x = jax.random.normal(k_x, (batch, state_dim), dtype=jnp.float32)

    mu, sigma, values = a3c_forward(x, packed, action_dim)
    jax.block_until_ready((mu, sigma, values))

    # sanity check vs pure-JAX f32 reference (loose tolerance: bf16 MXU operands)
    mu_r, sigma_r, values_r = a3c_forward_ref(x, params)
    assert mu.shape == (batch, action_dim)
    assert sigma.shape == (batch, action_dim)
    assert values.shape == (batch, 1)
    assert jnp.allclose(mu, mu_r, atol=3e-2), "mu mismatch"
    assert jnp.allclose(sigma, sigma_r, atol=3e-2), "sigma mismatch"
    assert jnp.allclose(values, values_r, atol=3e-2), "values mismatch"

    # TODO(synk): choose_action / loss_func (Normal sampling, log_prob, entropy)
    # are host-side training utilities, not part of the module's forward pass.

    print("KERNEL_OK")
</pallas_src>

<mosaic_0001>
module attributes {stable_mosaic.version = 11 : i64} {
  func.func @a3c_kernel(%arg0: i32, %arg1: memref<16x17xbf16, #tpu.memory_space<vmem>>, %arg2: memref<17x384xbf16, #tpu.memory_space<vmem>>, %arg3: memref<384x128xbf16, #tpu.memory_space<vmem>>, %arg4: memref<16x128xf32, #tpu.memory_space<vmem>>) attributes {dimension_semantics = [#tpu.dimension_semantics<parallel>], iteration_bounds = array<i64: 1>, scalar_prefetch = 0 : i64, scratch_operands = 0 : i64, tpu.core_type = #tpu.core_type<tc>, window_params = [{transform_indices = @transform_0, window_bounds = array<i64: 16, 17>}, {pipeline_mode = #tpu.pipeline_mode<synchronous>, transform_indices = @transform_1, window_bounds = array<i64: 17, 384>}, {pipeline_mode = #tpu.pipeline_mode<synchronous>, transform_indices = @transform_2, window_bounds = array<i64: 384, 128>}, {transform_indices = @transform_3, window_bounds = array<i64: 16, 128>}]} {
    %c0 = arith.constant 0 : index
    %c0_0 = arith.constant 0 : index
    %0 = vector.load %arg1[%c0, %c0_0] : memref<16x17xbf16, #tpu.memory_space<vmem>>, vector<16x17xbf16>
    %c0_1 = arith.constant 0 : index
    %c0_2 = arith.constant 0 : index
    %1 = vector.load %arg2[%c0_1, %c0_2] : memref<17x384xbf16, #tpu.memory_space<vmem>>, vector<17x384xbf16>
    %cst = arith.constant dense<0.000000e+00> : vector<16x384xf32>
    %2 = tpu.matmul %0, %1, %cst {dimension_numbers = #tpu.dot_dimension_numbers<[1], [0], [0], [1], [0, 0, 1, 1], [], []>} : vector<16x17xbf16>, vector<17x384xbf16>, vector<16x384xf32> -> vector<16x384xf32>
    %cst_3 = arith.constant 0.000000e+00 : f32
    %cst_4 = arith.constant 6.000000e+00 : f32
    %3 = vector.broadcast %cst_3 : f32 to vector<16x384xf32>
    %4 = arith.maximumf %3, %2 : vector<16x384xf32>
    %5 = vector.broadcast %cst_4 : f32 to vector<16x384xf32>
    %6 = arith.minimumf %5, %4 : vector<16x384xf32>
    %7 = arith.truncf %6 : vector<16x384xf32> to vector<16x384xbf16>
    %c0_5 = arith.constant 0 : index
    %c0_6 = arith.constant 0 : index
    %8 = vector.load %arg3[%c0_5, %c0_6] : memref<384x128xbf16, #tpu.memory_space<vmem>>, vector<384x128xbf16>
    %cst_7 = arith.constant dense<0.000000e+00> : vector<16x128xf32>
    %9 = tpu.matmul %7, %8, %cst_7 {dimension_numbers = #tpu.dot_dimension_numbers<[1], [0], [0], [1], [0, 0, 1, 1], [], []>} : vector<16x384xbf16>, vector<384x128xbf16>, vector<16x128xf32> -> vector<16x128xf32>
    %10 = tpu.iota {dimensions = array<i32: 1>} : vector<16x128xi32>
    %11 = math.tanh %9 : vector<16x128xf32>
    %cst_8 = arith.constant 2.000000e+00 : f32
    %12 = vector.broadcast %cst_8 : f32 to vector<16x128xf32>
    %13 = arith.mulf %12, %11 : vector<16x128xf32>
    %cst_9 = arith.constant 0.000000e+00 : f32
    %14 = vector.broadcast %cst_9 : f32 to vector<16x128xf32>
    %15 = arith.maximumf %9, %14 : vector<16x128xf32>
    %16 = math.absf %9 : vector<16x128xf32>
    %cst_10 = arith.constant 0.000000e+00 : f32
    %17 = vector.broadcast %cst_10 : f32 to vector<16x128xf32>
    %18 = arith.subf %17, %16 : vector<16x128xf32>
    %19 = math.exp %18 : vector<16x128xf32>
    %20 = math.log1p %19 : vector<16x128xf32>
    %21 = arith.addf %15, %20 : vector<16x128xf32>
    %cst_11 = arith.constant 1.000000e-03 : f32
    %22 = vector.broadcast %cst_11 : f32 to vector<16x128xf32>
    %23 = arith.addf %21, %22 : vector<16x128xf32>
    %c4_i32 = arith.constant 4 : i32
    %24 = vector.broadcast %c4_i32 : i32 to vector<16x128xi32>
    %25 = arith.cmpi slt, %10, %24 : vector<16x128xi32>
    %c8_i32 = arith.constant 8 : i32
    %26 = vector.broadcast %c8_i32 : i32 to vector<16x128xi32>
    %27 = arith.cmpi slt, %10, %26 : vector<16x128xi32>
    %28 = arith.select %27, %23, %9 : vector<16x128xi1>, vector<16x128xf32>
    %29 = arith.select %25, %13, %28 : vector<16x128xi1>, vector<16x128xf32>
    %c0_12 = arith.constant 0 : index
    %c0_13 = arith.constant 0 : index
    %30 = vector.load %arg4[%c0_12, %c0_13] : memref<16x128xf32, #tpu.memory_space<vmem>>, vector<16x128xf32>
    tpu.vector_store %arg4[%c0_12, %c0_13], %29 {strides = array<i32>} : memref<16x128xf32, #tpu.memory_space<vmem>>, vector<16x128xf32>,
    return
  }
  func.func @transform_0(%arg0: i32) -> (i32, i32) {
    %c0_i32 = arith.constant 0 : i32
    %c0_i32_0 = arith.constant 0 : i32
    return %arg0, %c0_i32 : i32, i32
  }
  func.func @transform_1(%arg0: i32) -> (i32, i32) {
    %c0_i32 = arith.constant 0 : i32
    %c0_i32_0 = arith.constant 0 : i32
    %c0_i32_1 = arith.constant 0 : i32
    return %c0_i32, %c0_i32_0 : i32, i32
  }
  func.func @transform_2(%arg0: i32) -> (i32, i32) {
    %c0_i32 = arith.constant 0 : i32
    %c0_i32_0 = arith.constant 0 : i32
    %c0_i32_1 = arith.constant 0 : i32
    return %c0_i32, %c0_i32_0 : i32, i32
  }
  func.func @transform_3(%arg0: i32) -> (i32, i32) {
    %c0_i32 = arith.constant 0 : i32
    %c0_i32_0 = arith.constant 0 : i32
    return %arg0, %c0_i32 : i32, i32
  }
}

</mosaic_0001>

<llo_original>
// kernel: tpu_custom_call.1
$region0: #{tpu_custom_call.1}
  #allocation0 [shape = 'u32[]', space=smem, size = 0x4, offset = 0x4, fixed_abs, tag = 'smem constant byte address 0x4 - core index']
  #allocation1 [shape = 'u32[144,128]{1,0:T(1,128)}', space=vmem, size = 0x12000, scoped, tag = 'internal scratch']
  %s0 = inlined_call_operand.hbm [shape: bf16[16,17], index: 0, kind: input, shape index: {}]
  %s1 = inlined_call_operand.hbm [shape: bf16[17,384], index: 1, kind: input, shape index: {}]
  %s2 = inlined_call_operand.hbm [shape: bf16[384,128], index: 2, kind: input, shape index: {}]
  %s3 = inlined_call_operand.hbm [shape: f32[16,128], index: 3, kind: output, shape index: {}]
  %s4 = sld [smem:[#allocation0]]
  $region34: #{tpu_custom_call.1} parent=0
    _
  %s6 = ssub.s32 1, %s4
  %s7 = scalar_select 0, %s6, %s4
  $region1: #{tpu_custom_call.1} parent=0
    #allocation2 [shape = 'u8[4096]{0}', space=vmem, size = 0x1000, scoped, tag = 'input window, operand 0, single buffered']
    #allocation3 [shape = 's32[1]{0}', space=sflag, size = 0x4, scoped, tag = 'scoped memory for tpu_custom_call.1']
    #allocation4 [shape = 's32[1]{0}', space=sflag, size = 0x4, scoped, tag = 'scoped memory for tpu_custom_call.1']
    #allocation5 [shape = 'u8[18432]{0}', space=vmem, size = 0x4800, scoped, tag = 'input window, operand 1, single buffered']
    #allocation6 [shape = 's32[1]{0}', space=sflag, size = 0x4, scoped, tag = 'scoped memory for tpu_custom_call.1']
    #allocation7 [shape = 'u8[98304]{0}', space=vmem, size = 0x18000, scoped, tag = 'input window, operand 2, single buffered']
    #allocation8 [shape = 'u8[8192]{0}', space=vmem, size = 0x2000, scoped, tag = 'output window, operand 0, single buffered']
    %8 = vsyncpa [#allocation3], 0
    %9 = vsyncpa [#allocation6], 0
    %10 = vsyncpa [#allocation4], 0
    // Predicated region
    $region2: #{tpu_custom_call.1} parent=1 // pred_check
      _
    $region3: #{tpu_custom_call.1} parent=1 // pred_check_branch
      %12 = sbr.rel (0) target = $region5
    $region4: #{tpu_custom_call.1} parent=1 // pred_region
      %s14 = ssub.s32 128, 128
      %15 = vsyncadd [#allocation3], %s14
      %s16 = sshll.u32 [#allocation2], 4
      %s17 = int_to_ptr.vmem [resolvable:$true] %s16
      %22 = dma.hbm_to_vmem [thread:$0]  %s0, 128, %s17, [#allocation3], 64, 64, 4
    $region5: #{tpu_custom_call.1} parent=1 // pred_fallthru
      _
    // Predicated region
    $region6: #{tpu_custom_call.1} parent=1 // pred_check
      _
    $region7: #{tpu_custom_call.1} parent=1 // pred_check_branch
      %24 = sbr.rel (0) target = $region9
    $region8: #{tpu_custom_call.1} parent=1 // pred_region
      %s26 = ssub.s32 576, 576
      %27 = vsyncadd [#allocation6], %s26
      %s28 = sshll.u32 [#allocation5], 4
      %s29 = int_to_ptr.vmem [resolvable:$true] %s28
      %34 = dma.hbm_to_vmem [thread:$0]  %s1, 576, %s29, [#allocation6], 192, 192, 12
    $region9: #{tpu_custom_call.1} parent=1 // pred_fallthru
      _
    // Predicated region
    $region10: #{tpu_custom_call.1} parent=1 // pred_check
      _
    $region11: #{tpu_custom_call.1} parent=1 // pred_check_branch
      %36 = sbr.rel (0) target = $region13
    $region12: #{tpu_custom_call.1} parent=1 // pred_region
      %s38 = ssub.s32 3072, 3072
      %39 = vsyncadd [#allocation6], %s38
      %s40 = sshll.u32 [#allocation7], 4
      %s41 = int_to_ptr.vmem [resolvable:$true] %s40
      %46 = dma.hbm_to_vmem [thread:$0]  %s2, 3072, %s41, [#allocation6], 64, 64, 4
    $region13: #{tpu_custom_call.1} parent=1 // pred_fallthru
      _
    // Predicated region
    $region14: #{tpu_custom_call.1} parent=1 // pred_check
      _
    $region15: #{tpu_custom_call.1} parent=1 // pred_check_branch
      %48 = sbr.rel (0) target = $region17
    $region16: #{tpu_custom_call.1} parent=1 // pred_region
      %49 = dma.done [#allocation3], 128
    $region17: #{tpu_custom_call.1} parent=1 // pred_fallthru
      _
    // Predicated region
    $region18: #{tpu_custom_call.1} parent=1 // pred_check
      _
    $region19: #{tpu_custom_call.1} parent=1 // pred_check_branch
      %51 = sbr.rel (0) target = $region21
    $region20: #{tpu_custom_call.1} parent=1 // pred_region
      %52 = dma.done [#allocation6], 576
    $region21: #{tpu_custom_call.1} parent=1 // pred_fallthru
      _
    // Predicated region
    $region22: #{tpu_custom_call.1} parent=1 // pred_check
      _
    $region23: #{tpu_custom_call.1} parent=1 // pred_check_branch
      %54 = sbr.rel (0) target = $region25
    $region24: #{tpu_custom_call.1} parent=1 // pred_region
      %55 = dma.done [#allocation6], 3072
    $region25: #{tpu_custom_call.1} parent=1 // pred_fallthru
      _
    %v57 = vld [vmem:[#allocation2] sm:$0xf]
    %v58 = vld [vmem:[#allocation2 + $0x4] sm:$0xf]
    %v59 = vld [vmem:[#allocation5] sm:$0xff]
    %v60 = vld [vmem:[#allocation5 + $0x8] sm:$0xf]
    %v61 = vld [vmem:[#allocation5 + $0xc] sm:$0xff]
    %v62 = vld [vmem:[#allocation5 + $0x14] sm:$0xf]
    %v63 = vld [vmem:[#allocation5 + $0x18] sm:$0x11]
    %v64 = vld [vmem:[#allocation5 + $0x20] sm:$0x1]
    %v67 = vunpack.c.l.b16 %v57
    %v68 = vunpack.c.l.b16 %v58
    %v69 = vpack.c.b16 %v68, %v67
    %v76 = vunpack.c.l.b16 %v59
    %v77 = vunpack.c.h.b16 %v59
    %v78 = vunpack.c.l.b16 %v60
    %v79 = vunpack.c.l.b16 %v61
    %v80 = vunpack.c.h.b16 %v61
    %v81 = vunpack.c.l.b16 %v62
    %v82 = vunpack.c.l.b16 %v63
    %v83 = vunpack.c.h.b16 %v63
    %v84 = vunpack.c.l.b16 %v64
    %v85 = vpack.c.b16 %v79, %v76
    %v86 = vpack.c.b16 %v80, %v77
    %v87 = vpack.c.b16 %v81, %v78
    %v88 = vpack.c.b16 %v82, %v82
    %v89 = vpack.c.b16 %v83, %v83
    %v90 = vpack.c.b16 %v84, %v84
    %vm94 = vcmask 138240
    %v96 = vsel %vm94, %v69, 0
    %vm98 = vcmask 1040384
    %v99 = vsel 0, 4294967295, 65535
    %v100 = vsel %vm98, %v99, 0
    %v102 = vand.u32 %v88, %v100
    %v105 = vand.u32 %v89, %v100
    %v108 = vand.u32 %v90, %v100
    %110 = vmatprep.subr.bf16.mxu0 %v86
    %111 = vmatpush1.bf16.msra.mxu0 %v85
    %112 = vmatprep.subr.bf16.mxu0 %v105
    %113 = vmatpush1.bf16.msra.mxu0 %v102
    %114 = vmatprep.subr.bf16.mxu0 0
    %115 = vmatpush1.bf16.msra.mxu0 0
    %116 = vmatprep.subr.bf16.mxu0 0
    %117 = vmatpush1.bf16.msra.mxu0 0
    %118 = vmatprep.subr.bf16.mxu0 0
    %119 = vmatpush1.bf16.msra.mxu0 0
    %120 = vmatprep.subr.bf16.mxu0 0
    %121 = vmatpush1.bf16.msra.mxu0 0
    %122 = vmatprep.subr.bf16.mxu0 0
    %123 = vmatpush1.bf16.msra.mxu0 0
    %124 = vmatprep.subr.bf16.mxu0 0
    %125 = vmatpush1.bf16.msra.mxu0 0
    %126 = vmatprep.subr.bf16.mxu0 0
    %127 = vmatpush1.bf16.msra.mxu0 0
    %128 = vmatprep.subr.bf16.mxu0 0
    %129 = vmatpush1.bf16.msra.mxu0 0
    %130 = vmatprep.subr.bf16.mxu0 0
    %131 = vmatpush1.bf16.msra.mxu0 0
    %132 = vmatprep.subr.bf16.mxu0 0
    %133 = vmatpush1.bf16.msra.mxu0 0
    %134 = vmatprep.subr.bf16.mxu0 0
    %135 = vmatpush1.bf16.msra.mxu0 0
    %136 = vmatprep.subr.bf16.mxu0 0
    %137 = vmatpush1.bf16.msra.mxu0 0
    %138 = vmatprep.subr.bf16.mxu0 0
    %139 = vmatpush1.bf16.msra.mxu0 0
    %140 = vmatprep.subr.bf16.mxu0 0
    %141 = vmatpush1.bf16.msra.mxu0 0
    %142 = vmatprep.mubr.bf16.mxu0 0
    %143 = vmatmul.mubr.bf16.gmra.mrb[0].mxu0 %v96
    %v144 = vpop.f32.mrb[0].mxu0
    %v145 = vadd.f32 0.0, %v144
    %v146 = vpop.f32.mrb[0].mxu0
    %v147 = vadd.f32 0.0, %v146
    %v148 = vpop.f32.mrb[0].mxu0
    %v149 = vadd.f32 0.0, %v148
    %v150 = vpop.f32.mrb[0].mxu0
    %v151 = vadd.f32 0.0, %v150
    %152 = vdwg.mxu0
    %153 = vmatprep.subr.bf16.mxu0 0
    %154 = vmatpush1.bf16.msra.mxu0 %v87
    %155 = vmatprep.subr.bf16.mxu0 0
    %156 = vmatpush1.bf16.msra.mxu0 %v108
    %157 = vmatprep.subr.bf16.mxu0 0
    %158 = vmatpush1.bf16.msra.mxu0 0
    %159 = vmatprep.subr.bf16.mxu0 0
    %160 = vmatpush1.bf16.msra.mxu0 0
    %161 = vmatprep.subr.bf16.mxu0 0
    %162 = vmatpush1.bf16.msra.mxu0 0
    %163 = vmatprep.subr.bf16.mxu0 0
    %164 = vmatpush1.bf16.msra.mxu0 0
    %165 = vmatprep.subr.bf16.mxu0 0
    %166 = vmatpush1.bf16.msra.mxu0 0
    %167 = vmatprep.subr.bf16.mxu0 0
    %168 = vmatpush1.bf16.msra.mxu0 0
    %169 = vmatprep.subr.bf16.mxu0 0
    %170 = vmatpush1.bf16.msra.mxu0 0
    %171 = vmatprep.subr.bf16.mxu0 0
    %172 = vmatpush1.bf16.msra.mxu0 0
    %173 = vmatprep.subr.bf16.mxu0 0
    %174 = vmatpush1.bf16.msra.mxu0 0
    %175 = vmatprep.subr.bf16.mxu0 0
    %176 = vmatpush1.bf16.msra.mxu0 0
    %177 = vmatprep.subr.bf16.mxu0 0
    %178 = vmatpush1.bf16.msra.mxu0 0
    %179 = vmatprep.subr.bf16.mxu0 0
    %180 = vmatpush1.bf16.msra.mxu0 0
    %181 = vmatprep.subr.bf16.mxu0 0
    %182 = vmatpush1.bf16.msra.mxu0 0
    %183 = vmatprep.subr.bf16.mxu0 0
    %184 = vmatpush1.bf16.msra.mxu0 0
    %185 = vmatprep.mubr.bf16.mxu0 0
    %186 = vmatmul.mubr.bf16.gmra.mrb[0].mxu0 %v96
    %v187 = vpop.f32.mrb[0].mxu0
    %v188 = vadd.f32 0.0, %v187
    %v189 = vpop.f32.mrb[0].mxu0
    %v190 = vpop.f32.mrb[0].mxu0
    %v191 = vadd.f32 0.0, %v190
    %v192 = vpop.f32.mrb[0].mxu0
    %193 = vdwg.mxu0
    %v194 = vmax.f32 %v145, 0.0
    %v195 = vmax.f32 %v147, 0.0
    %v196 = vmax.f32 %v188, 0.0
    %v197 = vmax.f32 %v149, 0.0
    %v198 = vmax.f32 %v151, 0.0
    %v199 = vmax.f32 %v191, 0.0
    %v200 = vmin.f32 %v194, 6.0
    %v201 = vmin.f32 %v195, 6.0
    %v202 = vmin.f32 %v196, 6.0
    %v203 = vmin.f32 %v197, 6.0
    %v204 = vmin.f32 %v198, 6.0
    %v205 = vmin.f32 %v199, 6.0
    %v206 = vpack.c.bf16 %v203, %v200
    %v207 = vpack.c.bf16 %v204, %v201
    %v208 = vpack.c.bf16 %v205, %v202
    %v209 = vld [vmem:[#allocation7] sm:$0xf]
    %v210 = vld [vmem:[#allocation7 + $0x4] sm:$0xf]
    %v211 = vld [vmem:[#allocation7 + $0x8] sm:$0xf]
    %v212 = vld [vmem:[#allocation7 + $0xc] sm:$0xf]
    %v213 = vld [vmem:[#allocation7 + $0x10] sm:$0xf]
    %v214 = vld [vmem:[#allocation7 + $0x14] sm:$0xf]
    %v215 = vld [vmem:[#allocation7 + $0x18] sm:$0xf]
    %v216 = vld [vmem:[#allocation7 + $0x1c] sm:$0xf]
    %v217 = vld [vmem:[#allocation7 + $0x20] sm:$0xf]
    %v218 = vld [vmem:[#allocation7 + $0x24] sm:$0xf]
    %v219 = vld [vmem:[#allocation7 + $0x28] sm:$0xf]
    %v220 = vld [vmem:[#allocation7 + $0x2c] sm:$0xf]
    %v221 = vld [vmem:[#allocation7 + $0x30] sm:$0xf]
    %v222 = vld [vmem:[#allocation7 + $0x34] sm:$0xf]
    %v223 = vld [vmem:[#allocation7 + $0x38] sm:$0xf]
    %v224 = vld [vmem:[#allocation7 + $0x3c] sm:$0xf]
    %v225 = vld [vmem:[#allocation7 + $0x40] sm:$0xf]
    %v226 = vld [vmem:[#allocation7 + $0x44] sm:$0xf]
    %v227 = vld [vmem:[#allocation7 + $0x48] sm:$0xf]
    %v228 = vld [vmem:[#allocation7 + $0x4c] sm:$0xf]
    %v229 = vld [vmem:[#allocation7 + $0x50] sm:$0xf]
    %v230 = vld [vmem:[#allocation7 + $0x54] sm:$0xf]
    %v231 = vld [vmem:[#allocation7 + $0x58] sm:$0xf]
    %v232 = vld [vmem:[#allocation7 + $0x5c] sm:$0xf]
    %v233 = vld [vmem:[#allocation7 + $0x60] sm:$0xf]
    %v234 = vld [vmem:[#allocation7 + $0x64] sm:$0xf]
    %v235 = vld [vmem:[#allocation7 + $0x68] sm:$0xf]
    %v236 = vld [vmem:[#allocation7 + $0x6c] sm:$0xf]
    %v237 = vld [vmem:[#allocation7 + $0x70] sm:$0xf]
    %v238 = vld [vmem:[#allocation7 + $0x74] sm:$0xf]
    %v239 = vld [vmem:[#allocation7 + $0x78] sm:$0xf]
    %v240 = vld [vmem:[#allocation7 + $0x7c] sm:$0xf]
    %v241 = vld [vmem:[#allocation7 + $0x80] sm:$0xf]
    %v242 = vld [vmem:[#allocation7 + $0x84] sm:$0xf]
    %v243 = vld [vmem:[#allocation7 + $0x88] sm:$0xf]
    %v244 = vld [vmem:[#allocation7 + $0x8c] sm:$0xf]
    %v245 = vld [vmem:[#allocation7 + $0x90] sm:$0xf]
    %v246 = vld [vmem:[#allocation7 + $0x94] sm:$0xf]
    %v247 = vld [vmem:[#allocation7 + $0x98] sm:$0xf]
    %v248 = vld [vmem:[#allocation7 + $0x9c] sm:$0xf]
    %v249 = vld [vmem:[#allocation7 + $0xa0] sm:$0xf]
    %v250 = vld [vmem:[#allocation7 + $0xa4] sm:$0xf]
    %v251 = vld [vmem:[#allocation7 + $0xa8] sm:$0xf]
    %v252 = vld [vmem:[#allocation7 + $0xac] sm:$0xf]
    %v253 = vld [vmem:[#allocation7 + $0xb0] sm:$0xf]
    %v254 = vld [vmem:[#allocation7 + $0xb4] sm:$0xf]
    %v255 = vld [vmem:[#allocation7 + $0xb8] sm:$0xf]
    %v256 = vld [vmem:[#allocation7 + $0xbc] sm:$0xf]
    %v305 = vunpack.c.l.b16 %v209
    %v306 = vunpack.c.l.b16 %v210
    %v307 = vunpack.c.l.b16 %v211
    %v308 = vunpack.c.l.b16 %v212
    %v309 = vunpack.c.l.b16 %v213
    %v310 = vunpack.c.l.b16 %v214
    %v311 = vunpack.c.l.b16 %v215
    %v312 = vunpack.c.l.b16 %v216
    %v313 = vunpack.c.l.b16 %v217
    %v314 = vunpack.c.l.b16 %v218
    %v315 = vunpack.c.l.b16 %v219
    %v316 = vunpack.c.l.b16 %v220
    %v317 = vunpack.c.l.b16 %v221
    %v318 = vunpack.c.l.b16 %v222
    %v319 = vunpack.c.l.b16 %v223
    %v320 = vunpack.c.l.b16 %v224
    %v321 = vunpack.c.l.b16 %v225
    %v322 = vunpack.c.l.b16 %v226
    %v323 = vunpack.c.l.b16 %v227
    %v324 = vunpack.c.l.b16 %v228
    %v325 = vunpack.c.l.b16 %v229
    %v326 = vunpack.c.l.b16 %v230
    %v327 = vunpack.c.l.b16 %v231
    %v328 = vunpack.c.l.b16 %v232
    %v329 = vunpack.c.l.b16 %v233
    %v330 = vunpack.c.l.b16 %v234
    %v331 = vunpack.c.l.b16 %v235
    %v332 = vunpack.c.l.b16 %v236
    %v333 = vunpack.c.l.b16 %v237
    %v334 = vunpack.c.l.b16 %v238
    %v335 = vunpack.c.l.b16 %v239
    %v336 = vunpack.c.l.b16 %v240
    %v337 = vunpack.c.l.b16 %v241
    %v338 = vunpack.c.l.b16 %v242
    %v339 = vunpack.c.l.b16 %v243
    %v340 = vunpack.c.l.b16 %v244
    %v341 = vunpack.c.l.b16 %v245
    %v342 = vunpack.c.l.b16 %v246
    %v343 = vunpack.c.l.b16 %v247
    %v344 = vunpack.c.l.b16 %v248
    %v345 = vunpack.c.l.b16 %v249
    %v346 = vunpack.c.l.b16 %v250
    %v347 = vunpack.c.l.b16 %v251
    %v348 = vunpack.c.l.b16 %v252
    %v349 = vunpack.c.l.b16 %v253
    %v350 = vunpack.c.l.b16 %v254
    %v351 = vunpack.c.l.b16 %v255
    %v352 = vunpack.c.l.b16 %v256
    %v353 = vpack.c.b16 %v306, %v305
    %v354 = vpack.c.b16 %v308, %v307
    %v355 = vpack.c.b16 %v310, %v309
    %v356 = vpack.c.b16 %v312, %v311
    %v357 = vpack.c.b16 %v314, %v313
    %v358 = vpack.c.b16 %v316, %v315
    %v359 = vpack.c.b16 %v318, %v317
    %v360 = vpack.c.b16 %v320, %v319
    %v361 = vpack.c.b16 %v322, %v321
    %v362 = vpack.c.b16 %v324, %v323
    %v363 = vpack.c.b16 %v326, %v325
    %v364 = vpack.c.b16 %v328, %v327
    %v365 = vpack.c.b16 %v330, %v329
    %v366 = vpack.c.b16 %v332, %v331
    %v367 = vpack.c.b16 %v334, %v333
    %v368 = vpack.c.b16 %v336, %v335
    %v369 = vpack.c.b16 %v338, %v337
    %v370 = vpack.c.b16 %v340, %v339
    %v371 = vpack.c.b16 %v342, %v341
    %v372 = vpack.c.b16 %v344, %v343
    %v373 = vpack.c.b16 %v346, %v345
    %v374 = vpack.c.b16 %v348, %v347
    %v375 = vpack.c.b16 %v350, %v349
    %v376 = vpack.c.b16 %v352, %v351
    %401 = vmatprep.subr.bf16.mxu0 0
    %402 = vmatpush1.bf16.msra.mxu0 %v353
    %403 = vmatprep.subr.bf16.mxu0 0
    %404 = vmatpush1.bf16.msra.mxu0 %v354
    %405 = vmatprep.subr.bf16.mxu0 0
    %406 = vmatpush1.bf16.msra.mxu0 %v355
    %407 = vmatprep.subr.bf16.mxu0 0
    %408 = vmatpush1.bf16.msra.mxu0 %v356
    %409 = vmatprep.subr.bf16.mxu0 0
    %410 = vmatpush1.bf16.msra.mxu0 %v357
    %411 = vmatprep.subr.bf16.mxu0 0
    %412 = vmatpush1.bf16.msra.mxu0 %v358
    %413 = vmatprep.subr.bf16.mxu0 0
    %414 = vmatpush1.bf16.msra.mxu0 %v359
    %415 = vmatprep.subr.bf16.mxu0 0
    %416 = vmatpush1.bf16.msra.mxu0 %v360
    %417 = vmatprep.subr.bf16.mxu0 0
    %418 = vmatpush1.bf16.msra.mxu0 %v361
    %419 = vmatprep.subr.bf16.mxu0 0
    %420 = vmatpush1.bf16.msra.mxu0 %v362
    %421 = vmatprep.subr.bf16.mxu0 0
    %422 = vmatpush1.bf16.msra.mxu0 %v363
    %423 = vmatprep.subr.bf16.mxu0 0
    %424 = vmatpush1.bf16.msra.mxu0 %v364
    %425 = vmatprep.subr.bf16.mxu0 0
    %426 = vmatpush1.bf16.msra.mxu0 %v365
    %427 = vmatprep.subr.bf16.mxu0 0
    %428 = vmatpush1.bf16.msra.mxu0 %v366
    %429 = vmatprep.subr.bf16.mxu0 0
    %430 = vmatpush1.bf16.msra.mxu0 %v367
    %431 = vmatprep.subr.bf16.mxu0 0
    %432 = vmatpush1.bf16.msra.mxu0 %v368
    %433 = vmatprep.mubr.bf16.mxu0 %v207
    %434 = vmatmul.mubr.bf16.gmra.mrb[0].mxu0 %v206
    %v435 = vpop.f32.mrb[0].mxu0
    %v436 = vadd.f32 0.0, %v435
    %v437 = vpop.f32.mrb[0].mxu0
    %v438 = vpop.f32.mrb[0].mxu0
    %v439 = vadd.f32 0.0, %v438
    %v440 = vpop.f32.mrb[0].mxu0
    %441 = vdwg.mxu0
    %442 = vmatprep.subr.bf16.mxu0 0
    %443 = vmatpush1.bf16.msra.mxu0 %v369
    %444 = vmatprep.subr.bf16.mxu0 0
    %445 = vmatpush1.bf16.msra.mxu0 %v370
    %446 = vmatprep.subr.bf16.mxu0 0
    %447 = vmatpush1.bf16.msra.mxu0 %v371
    %448 = vmatprep.subr.bf16.mxu0 0
    %449 = vmatpush1.bf16.msra.mxu0 %v372
    %450 = vmatprep.subr.bf16.mxu0 0
    %451 = vmatpush1.bf16.msra.mxu0 %v373
    %452 = vmatprep.subr.bf16.mxu0 0
    %453 = vmatpush1.bf16.msra.mxu0 %v374
    %454 = vmatprep.subr.bf16.mxu0 0
    %455 = vmatpush1.bf16.msra.mxu0 %v375
    %456 = vmatprep.subr.bf16.mxu0 0
    %457 = vmatpush1.bf16.msra.mxu0 %v376
    %458 = vmatprep.subr.bf16.mxu0 0
    %459 = vmatpush1.bf16.msra.mxu0 0
    %460 = vmatprep.subr.bf16.mxu0 0
    %461 = vmatpush1.bf16.msra.mxu0 0
    %462 = vmatprep.subr.bf16.mxu0 0
    %463 = vmatpush1.bf16.msra.mxu0 0
    %464 = vmatprep.subr.bf16.mxu0 0
    %465 = vmatpush1.bf16.msra.mxu0 0
    %466 = vmatprep.subr.bf16.mxu0 0
    %467 = vmatpush1.bf16.msra.mxu0 0
    %468 = vmatprep.subr.bf16.mxu0 0
    %469 = vmatpush1.bf16.msra.mxu0 0
    %470 = vmatprep.subr.bf16.mxu0 0
    %471 = vmatpush1.bf16.msra.mxu0 0
    %472 = vmatprep.subr.bf16.mxu0 0
    %473 = vmatpush1.bf16.msra.mxu0 0
    %474 = vmatprep.mubr.bf16.mxu0 0
    %475 = vmatmul.mubr.bf16.gmra.mrb[0].mxu0 %v208
    %v476 = vpop.f32.mrb[0].mxu0
    %v477 = vadd.f32 %v436, %v476
    %v478 = vpop.f32.mrb[0].mxu0
    %v479 = vpop.f32.mrb[0].mxu0
    %v480 = vadd.f32 %v439, %v479
    %v481 = vpop.f32.mrb[0].mxu0
    %482 = vdwg.mxu0
    %v483 = vlaneseq
    %v484 = vand.u32 %v483, 127
    %v485 = vtanh.pop %v477
    %v486 = vtanh.pop %v480
    %v487 = vmul.f32 %v485, 2.0
    %v488 = vmul.f32 %v486, 2.0
    %v489 = vmax.f32 %v477, 0.0
    %v490 = vmax.f32 %v480, 0.0
    %v491 = vand.u32 2147483647, %v477
    %v492 = vand.u32 2147483647, %v480
    %v493 = vsub.f32 0.0, %v491
    %v494 = vsub.f32 0.0, %v492
    %v495 = vmul.f32 %v493, 1.442695
    %v496 = vpow.pop %v495
    %v497 = vmul.f32 %v494, 1.442695
    %v498 = vpow.pop %v497
    %v499 = vadd.f32 %v496, 1.0
    %v500 = vlog2.pop %v499
    %v501 = vmul.f32 %v500, 0.6931472
    %v502 = vmul.f32 -0.5, %v496
    %v503 = vadd.f32 %v502, 1.0
    %v504 = vmul.f32 %v503, %v496
    %v505 = vand.u32 2147483647, %v496
    %vm506 = vcmp.lt.f32.partialorder %v505, 0.0004427343
    %v507 = vsel %vm506, %v504, %v501
    %v508 = vadd.f32 %v498, 1.0
    %v509 = vlog2.pop %v508
    %v510 = vmul.f32 %v509, 0.6931472
    %v511 = vmul.f32 -0.5, %v498
    %v512 = vadd.f32 %v511, 1.0
    %v513 = vmul.f32 %v512, %v498
    %v514 = vand.u32 2147483647, %v498
    %vm515 = vcmp.lt.f32.partialorder %v514, 0.0004427343
    %v516 = vsel %vm515, %v513, %v510
    %v517 = vadd.f32 %v489, %v507
    %v518 = vadd.f32 %v490, %v516
    %v519 = vadd.f32 %v517, 0.001
    %v520 = vadd.f32 %v518, 0.001
    %vm521 = vcmp.lt.s32.totalorder %v484, 4
    %vm522 = vcmp.lt.s32.totalorder %v484, 8
    %v523 = vsel %vm522, %v519, %v477
    %v524 = vsel %vm522, %v520, %v480
    %v525 = vsel %vm521, %v487, %v523
    %v526 = vsel %vm521, %v488, %v524
    %527 = vst [vmem:[#allocation8] sm:$0xff] %v525
    %528 = vst [vmem:[#allocation8 + $0x8] sm:$0xff] %v526
    // Predicated region
    $region26: #{tpu_custom_call.1} parent=1 // pred_check
      _
    $region27: #{tpu_custom_call.1} parent=1 // pred_check_branch
      %530 = sbr.rel (0) target = $region29
    $region28: #{tpu_custom_call.1} parent=1 // pred_region
      %s532 = ssub.s32 256, 256
      %533 = vsyncadd [#allocation4], %s532
      %s534 = sshll.u32 [#allocation8], 4
      %s535 = int_to_ptr.vmem [resolvable:$true] %s534
      %540 = dma.vmem_to_hbm [thread:$0]  %s535, 256, %s3, [#allocation4], 128, 128, 8
    $region29: #{tpu_custom_call.1} parent=1 // pred_fallthru
      _
    // Predicated region
    $region30: #{tpu_custom_call.1} parent=1 // pred_check
      _
    $region31: #{tpu_custom_call.1} parent=1 // pred_check_branch
      %542 = sbr.rel (0) target = $region33
    $region32: #{tpu_custom_call.1} parent=1 // pred_region
      %543 = dma.done [#allocation4], 256
    $region33: #{tpu_custom_call.1} parent=1 // pred_fallthru
      _
    %544 = vsyncpa [#allocation3], 1
    %545 = vsyncpa [#allocation6], 1
    %546 = vsyncpa [#allocation4], 1

</llo_original>
